<compile_context>
chip_gen: v7x
topology: tpu7x:2x2x1
jax: 0.10.0
libtpu: 0.0.40
codegen_flags: <defaults>
</compile_context>

<pallas_src>
import functools

import jax
import jax.numpy as jnp
from jax.experimental import pallas as pl
from jax.experimental.pallas import tpu as pltpu


def _moonnet_kernel(xt_ref, w1_ref, b1_ref, w2_ref, b2_ref, out_ref):
    """Fused fc1 -> ReLU -> fc2 on one batch tile (batch on lanes).

    xt_ref : (2, TILE_B)      bf16   input tile, pipelined
    w1_ref : (H_pad, 2)       bf16   fc1.weight (zero-padded rows), resident
    b1_ref : (H_pad, 1)       h_dt   fc1.bias column (h_dt = bf16 on v6e/v7x, f32 on v5e)
    w2_ref : (1, H_pad)       h_dt   fc2.weight row (zero-padded cols), resident
    b2_ref : (1, 1)           f32    fc2.bias, resident
    out_ref: (1, TILE_B)      f32    logits, lane-dense row
    """
    # fc1 on the MXU: (H_pad, 2) @ (2, TILE_B) -> (H_pad, TILE_B), f32 accumulation.
    h = jnp.dot(w1_ref[...], xt_ref[...], preferred_element_type=jnp.float32)
    # Bias + ReLU on the VPU in the intermediate dtype (bf16 where the VPU supports it).
    h = jnp.maximum(h.astype(b1_ref.dtype) + b1_ref[...], 0)
    # fc2 as a second MXU matmul: (1, H_pad) @ (H_pad, TILE_B) -> (1, TILE_B), f32 acc.
    out_ref[...] = (
        jnp.dot(w2_ref[...], h, preferred_element_type=jnp.float32) + b2_ref[...]
    )


def _round_up(x, m):
    return ((x + m - 1) // m) * m


def _bf16_intermediate_default():
    """Use a bf16 hidden intermediate only on chips with a packed-bf16 VPU (v6e/v7x)."""
    try:
        kind = jax.devices()[0].device_kind.lower()
    except Exception:
        return True
    if any(tag in kind for tag in ("v2", "v3", "v4", "v5")):
        return False
    return True


@functools.partial(jax.jit, static_argnames=("tile_b", "bf16_intermediate"))
def moonnet_forward(x, params, *, tile_b=2048, bf16_intermediate=True):
    """MoonNet forward. x: (B, 2) f32. Returns (B, 1) logits like the PyTorch module."""
    assert tile_b % 128 == 0
    w1, b1, w2, b2 = params          # (H, 2), (H,), (1, H), (1,)  -- PyTorch layouts
    B = x.shape[0]
    H = w1.shape[0]

    h_dtype = jnp.bfloat16 if bf16_intermediate else jnp.float32
    h_bytes = jnp.dtype(h_dtype).itemsize

    # Lane/sublane-aligned hidden dim; zero padding keeps the output bit-identical.
    H_pad = _round_up(max(H, 8), 128)
    TILE_B = min(tile_b, _round_up(B, 128))
    B_pad = _round_up(B, TILE_B)
    grid = (B_pad // TILE_B,)

    # Host pre-pass: cast to bf16 BEFORE pad+transpose (halves the bytes of that pass).
    xt = jnp.pad(x.astype(jnp.bfloat16), ((0, B_pad - B), (0, 0))).T      # (2, B_pad)
    w1_p = jnp.pad(w1.astype(jnp.bfloat16), ((0, H_pad - H), (0, 0)))     # (H_pad, 2)
    b1_p = jnp.pad(b1.astype(h_dtype), (0, H_pad - H)).reshape(H_pad, 1)  # (H_pad, 1)
    w2_p = jnp.pad(w2.astype(h_dtype), ((0, 0), (0, H_pad - H)))          # (1, H_pad)
    b2_p = b2.reshape(1, 1).astype(jnp.float32)                           # (1, 1)

    # Explicit VMEM budget: covers the (H_pad, TILE_B) intermediate (plus compiler
    # temporaries) above v5e's 16 MiB scoped default, capped well under v7x's 64 MiB.
    interm_bytes = H_pad * TILE_B * h_bytes
    vmem_limit = int(min(48 * 1024 * 1024,
                         max(32 * 1024 * 1024, 3 * interm_bytes + (8 << 20))))

    cost = pl.CostEstimate(
        flops=8 * H_pad * B_pad,            # fc1 (4) + bias/relu (2) + fc2 (2) per elem
        transcendentals=0,
        bytes_accessed=(xt.size * 2 + B_pad * 4
                        + w1_p.size * 2 + b1_p.size * h_bytes
                        + w2_p.size * h_bytes + 4),
    )

    out = pl.pallas_call(
        _moonnet_kernel,
        out_shape=jax.ShapeDtypeStruct((1, B_pad), jnp.float32),
        grid=grid,
        in_specs=[
            pl.BlockSpec((2, TILE_B), lambda i: (0, i)),   # x tile (auto double-buffered)
            pl.BlockSpec((H_pad, 2), lambda i: (0, 0)),    # resident weights / biases
            pl.BlockSpec((H_pad, 1), lambda i: (0, 0)),
            pl.BlockSpec((1, H_pad), lambda i: (0, 0)),
            pl.BlockSpec((1, 1), lambda i: (0, 0)),
        ],
        out_specs=pl.BlockSpec((1, TILE_B), lambda i: (0, i)),
        compiler_params=pltpu.CompilerParams(
            dimension_semantics=("parallel",),
            vmem_limit_bytes=vmem_limit,
        ),
        cost_estimate=cost,
    )(xt, w1_p, b1_p, w2_p, b2_p)

    return out[0, :B][:, None]               # (B, 1), matches nn.Linear(H, 1) output


def init_moonnet_params(key, hidden_dim=500):
    """PyTorch-default-style init, native nn.Linear layouts."""
    k1, k2, k3, k4 = jax.random.split(key, 4)
    lim1 = 1.0 / (2.0 ** 0.5)
    w1 = jax.random.uniform(k1, (hidden_dim, 2), jnp.float32, -lim1, lim1)   # fc1.weight
    b1 = jax.random.uniform(k2, (hidden_dim,), jnp.float32, -lim1, lim1)     # fc1.bias
    lim2 = 1.0 / (hidden_dim ** 0.5)
    w2 = jax.random.uniform(k3, (1, hidden_dim), jnp.float32, -lim2, lim2)   # fc2.weight
    b2 = jax.random.uniform(k4, (1,), jnp.float32, -lim2, lim2)              # fc2.bias
    return (w1, b1, w2, b2)


def _reference_forward(x, params):
    """Pure-JAX f32 reference: fc2(relu(fc1(x)))."""
    w1, b1, w2, b2 = params
    h = jnp.maximum(x @ w1.T + b1, 0.0)
    return h @ w2.T + b2                      # (B, 1)


if __name__ == "__main__":
    use_bf16 = _bf16_intermediate_default()   # bf16 hidden on v6e/v7x, f32 on v5e/older

    key = jax.random.PRNGKey(0)
    kx, kp, kx2, kp2 = jax.random.split(key, 4)

    # Shapes consistent with the module: x (B, 2), hidden_dim = 500 (default).
    B, H = 16, 500
    x = jax.random.normal(kx, (B, 2), jnp.float32)
    params = init_moonnet_params(kp, hidden_dim=H)

    out = jax.block_until_ready(moonnet_forward(x, params, bf16_intermediate=use_bf16))
    ref = _reference_forward(x, params)
    assert out.shape == (B, 1)
    assert jnp.allclose(out, ref, atol=3e-2, rtol=3e-2)   # bf16-in / f32-acc tolerance

    # Second config exercises a multi-step batch grid (grid=(3,)) + batch and H padding.
    B2, H2 = 300, 64
    x2 = jax.random.normal(kx2, (B2, 2), jnp.float32)
    params2 = init_moonnet_params(kp2, hidden_dim=H2)
    out2 = jax.block_until_ready(
        moonnet_forward(x2, params2, tile_b=128, bf16_intermediate=use_bf16))
    ref2 = _reference_forward(x2, params2)
    assert out2.shape == (B2, 1)
    assert jnp.allclose(out2, ref2, atol=3e-2, rtol=3e-2)

    print("KERNEL_OK")
</pallas_src>

<mosaic_0001>
module attributes {stable_mosaic.version = 11 : i64} {
  func.func @_moonnet_kernel(%arg0: i32, %arg1: memref<2x128xbf16, #tpu.memory_space<vmem>>, %arg2: memref<512x2xbf16, #tpu.memory_space<vmem>>, %arg3: memref<512x1xbf16, #tpu.memory_space<vmem>>, %arg4: memref<1x512xbf16, #tpu.memory_space<vmem>>, %arg5: memref<1x1xf32, #tpu.memory_space<vmem>>, %arg6: memref<1x128xf32, #tpu.memory_space<vmem>>) attributes {dimension_semantics = [#tpu.dimension_semantics<parallel>], iteration_bounds = array<i64: 1>, scalar_prefetch = 0 : i64, scratch_operands = 0 : i64, tpu.core_type = #tpu.core_type<tc>, window_params = [{transform_indices = @transform_0, window_bounds = array<i64: 2, 128>}, {pipeline_mode = #tpu.pipeline_mode<synchronous>, transform_indices = @transform_1, window_bounds = array<i64: 512, 2>}, {pipeline_mode = #tpu.pipeline_mode<synchronous>, transform_indices = @transform_2, window_bounds = array<i64: 512, 1>}, {pipeline_mode = #tpu.pipeline_mode<synchronous>, transform_indices = @transform_3, window_bounds = array<i64: 1, 512>}, {pipeline_mode = #tpu.pipeline_mode<synchronous>, transform_indices = @transform_4, window_bounds = array<i64: 1, 1>}, {transform_indices = @transform_5, window_bounds = array<i64: 1, 128>}]} {
    %c0 = arith.constant 0 : index
    %c0_0 = arith.constant 0 : index
    %0 = vector.load %arg2[%c0, %c0_0] : memref<512x2xbf16, #tpu.memory_space<vmem>>, vector<512x2xbf16>
    %c0_1 = arith.constant 0 : index
    %c0_2 = arith.constant 0 : index
    %1 = vector.load %arg1[%c0_1, %c0_2] : memref<2x128xbf16, #tpu.memory_space<vmem>>, vector<2x128xbf16>
    %cst = arith.constant dense<0.000000e+00> : vector<512x128xf32>
    %2 = tpu.matmul %0, %1, %cst {dimension_numbers = #tpu.dot_dimension_numbers<[1], [0], [0], [1], [0, 0, 1, 1], [], []>} : vector<512x2xbf16>, vector<2x128xbf16>, vector<512x128xf32> -> vector<512x128xf32>
    %3 = arith.truncf %2 : vector<512x128xf32> to vector<512x128xbf16>
    %c0_3 = arith.constant 0 : index
    %c0_4 = arith.constant 0 : index
    %4 = vector.load %arg3[%c0_3, %c0_4] : memref<512x1xbf16, #tpu.memory_space<vmem>>, vector<512x1xbf16>
    %5 = vector.broadcast %4 : vector<512x1xbf16> to vector<512x128xbf16>
    %6 = arith.addf %3, %5 : vector<512x128xbf16>
    %cst_5 = arith.constant 0.000000e+00 : bf16
    %7 = vector.broadcast %cst_5 : bf16 to vector<512x128xbf16>
    %8 = arith.maximumf %6, %7 : vector<512x128xbf16>
    %c0_6 = arith.constant 0 : index
    %c0_7 = arith.constant 0 : index
    %9 = vector.load %arg4[%c0_6, %c0_7] : memref<1x512xbf16, #tpu.memory_space<vmem>>, vector<1x512xbf16>
    %cst_8 = arith.constant dense<0.000000e+00> : vector<1x128xf32>
    %10 = tpu.matmul %9, %8, %cst_8 {dimension_numbers = #tpu.dot_dimension_numbers<[1], [0], [0], [1], [0, 0, 1, 1], [], []>} : vector<1x512xbf16>, vector<512x128xbf16>, vector<1x128xf32> -> vector<1x128xf32>
    %c0_9 = arith.constant 0 : index
    %c0_10 = arith.constant 0 : index
    %11 = vector.load %arg5[%c0_9, %c0_10] : memref<1x1xf32, #tpu.memory_space<vmem>>, vector<1x1xf32>
    %12 = vector.broadcast %11 : vector<1x1xf32> to vector<1x128xf32>
    %13 = arith.addf %10, %12 : vector<1x128xf32>
    %c0_11 = arith.constant 0 : index
    %c0_12 = arith.constant 0 : index
    %14 = vector.load %arg6[%c0_11, %c0_12] : memref<1x128xf32, #tpu.memory_space<vmem>>, vector<1x128xf32>
    tpu.vector_store %arg6[%c0_11, %c0_12], %13 {strides = array<i32>} : memref<1x128xf32, #tpu.memory_space<vmem>>, vector<1x128xf32>,
    return
  }
  func.func @transform_0(%arg0: i32) -> (i32, i32) {
    %c0_i32 = arith.constant 0 : i32
    %c0_i32_0 = arith.constant 0 : i32
    return %c0_i32, %arg0 : i32, i32
  }
  func.func @transform_1(%arg0: i32) -> (i32, i32) {
    %c0_i32 = arith.constant 0 : i32
    %c0_i32_0 = arith.constant 0 : i32
    %c0_i32_1 = arith.constant 0 : i32
    return %c0_i32, %c0_i32_0 : i32, i32
  }
  func.func @transform_2(%arg0: i32) -> (i32, i32) {
    %c0_i32 = arith.constant 0 : i32
    %c0_i32_0 = arith.constant 0 : i32
    %c0_i32_1 = arith.constant 0 : i32
    return %c0_i32, %c0_i32_0 : i32, i32
  }
  func.func @transform_3(%arg0: i32) -> (i32, i32) {
    %c0_i32 = arith.constant 0 : i32
    %c0_i32_0 = arith.constant 0 : i32
    %c0_i32_1 = arith.constant 0 : i32
    return %c0_i32, %c0_i32_0 : i32, i32
  }
  func.func @transform_4(%arg0: i32) -> (i32, i32) {
    %c0_i32 = arith.constant 0 : i32
    %c0_i32_0 = arith.constant 0 : i32
    %c0_i32_1 = arith.constant 0 : i32
    return %c0_i32, %c0_i32_0 : i32, i32
  }
  func.func @transform_5(%arg0: i32) -> (i32, i32) {
    %c0_i32 = arith.constant 0 : i32
    %c0_i32_0 = arith.constant 0 : i32
    return %c0_i32, %arg0 : i32, i32
  }
}

</mosaic_0001>

<llo_original>
// kernel: moonnet_forward.1
$region0: #{moonnet_forward.1}
  #allocation0 [shape = 'u32[]', space=smem, size = 0x4, offset = 0x4, fixed_abs, tag = 'smem constant byte address 0x4 - core index']
  #allocation1 [shape = 'u32[144,128]{1,0:T(1,128)}', space=vmem, size = 0x12000, scoped, tag = 'internal scratch']
  #allocation2 [shape = 'f32[1,1]{1,0:T(1,128)S(1)}', space=vmem, size = 0x200, scoped, tag = 'scoped memory for moonnet_forward.1']
  %s0 = inlined_call_operand.vmem [shape: bf16[2,128], index: 0, kind: input, shape index: {}]
  %s1 = inlined_call_operand.vmem [shape: bf16[512,2], index: 1, kind: input, shape index: {}]
  %s2 = inlined_call_operand.vmem [shape: bf16[512,1], index: 2, kind: input, shape index: {}]
  %s3 = inlined_call_operand.vmem [shape: bf16[1,512], index: 3, kind: input, shape index: {}]
  %s4 = inlined_call_operand.<no memory space> [shape: f32[1,1], index: 4, kind: input, shape index: {}]
  %s5 = inlined_call_operand.vmem [shape: f32[1,128], index: 5, kind: output, shape index: {}]
  %s6 = sld [smem:[#allocation0]]
  $region30: #{moonnet_forward.1} parent=0
    _
  %s8 = ssub.s32 1, %s6
  %s9 = scalar_select 0, %s8, %s6
  %v10 = vstv %s4
  %11 = vst [vmem:[#allocation2] sm:$0x1] %v10
  // Predicated region
  $region2: #{moonnet_forward.1} parent=0 // pred_check
    _
  $region3: #{moonnet_forward.1} parent=0 // pred_check_branch
    %13 = sbr.rel (0) target = $region5
  $region4: #{moonnet_forward.1} parent=0 // pred_region
    _
  $region5: #{moonnet_forward.1} parent=0 // pred_fallthru
    _
  // Predicated region
  $region6: #{moonnet_forward.1} parent=0 // pred_check
    _
  $region7: #{moonnet_forward.1} parent=0 // pred_check_branch
    %15 = sbr.rel (0) target = $region9
  $region8: #{moonnet_forward.1} parent=0 // pred_region
    _
  $region9: #{moonnet_forward.1} parent=0 // pred_fallthru
    _
  // Predicated region
  $region10: #{moonnet_forward.1} parent=0 // pred_check
    _
  $region11: #{moonnet_forward.1} parent=0 // pred_check_branch
    %17 = sbr.rel (0) target = $region13
  $region12: #{moonnet_forward.1} parent=0 // pred_region
    _
  $region13: #{moonnet_forward.1} parent=0 // pred_fallthru
    _
  // Predicated region
  $region14: #{moonnet_forward.1} parent=0 // pred_check
    _
  $region15: #{moonnet_forward.1} parent=0 // pred_check_branch
    %19 = sbr.rel (0) target = $region17
  $region16: #{moonnet_forward.1} parent=0 // pred_region
    _
  $region17: #{moonnet_forward.1} parent=0 // pred_fallthru
    _
  // Predicated region
  $region18: #{moonnet_forward.1} parent=0 // pred_check
    _
  $region19: #{moonnet_forward.1} parent=0 // pred_check_branch
    %21 = sbr.rel (0) target = $region21
  $region20: #{moonnet_forward.1} parent=0 // pred_region
    _
  $region21: #{moonnet_forward.1} parent=0 // pred_fallthru
    _
  %v23 = vld [vmem:[%s1] sm:$0xf]
  %v24 = vld [vmem:[%s1 + $0x4] sm:$0xf]
  %v25 = vld [vmem:[%s1 + $0x8] sm:$0xf]
  %v26 = vld [vmem:[%s1 + $0xc] sm:$0xf]
  %v27 = vld [vmem:[%s1 + $0x10] sm:$0xf]
  %v28 = vld [vmem:[%s1 + $0x14] sm:$0xf]
  %v29 = vld [vmem:[%s1 + $0x18] sm:$0xf]
  %v30 = vld [vmem:[%s1 + $0x1c] sm:$0xf]
  %v31 = vld [vmem:[%s1 + $0x20] sm:$0xf]
  %v32 = vld [vmem:[%s1 + $0x24] sm:$0xf]
  %v33 = vld [vmem:[%s1 + $0x28] sm:$0xf]
  %v34 = vld [vmem:[%s1 + $0x2c] sm:$0xf]
  %v35 = vld [vmem:[%s1 + $0x30] sm:$0xf]
  %v36 = vld [vmem:[%s1 + $0x34] sm:$0xf]
  %v37 = vld [vmem:[%s1 + $0x38] sm:$0xf]
  %v38 = vld [vmem:[%s1 + $0x3c] sm:$0xf]
  %v39 = vld [vmem:[%s1 + $0x40] sm:$0xf]
  %v40 = vld [vmem:[%s1 + $0x44] sm:$0xf]
  %v41 = vld [vmem:[%s1 + $0x48] sm:$0xf]
  %v42 = vld [vmem:[%s1 + $0x4c] sm:$0xf]
  %v43 = vld [vmem:[%s1 + $0x50] sm:$0xf]
  %v44 = vld [vmem:[%s1 + $0x54] sm:$0xf]
  %v45 = vld [vmem:[%s1 + $0x58] sm:$0xf]
  %v46 = vld [vmem:[%s1 + $0x5c] sm:$0xf]
  %v47 = vld [vmem:[%s1 + $0x60] sm:$0xf]
  %v48 = vld [vmem:[%s1 + $0x64] sm:$0xf]
  %v49 = vld [vmem:[%s1 + $0x68] sm:$0xf]
  %v50 = vld [vmem:[%s1 + $0x6c] sm:$0xf]
  %v51 = vld [vmem:[%s1 + $0x70] sm:$0xf]
  %v52 = vld [vmem:[%s1 + $0x74] sm:$0xf]
  %v53 = vld [vmem:[%s1 + $0x78] sm:$0xf]
  %v54 = vld [vmem:[%s1 + $0x7c] sm:$0xf]
  %v55 = vld [vmem:[%s1 + $0x80] sm:$0xf]
  %v56 = vld [vmem:[%s1 + $0x84] sm:$0xf]
  %v57 = vld [vmem:[%s1 + $0x88] sm:$0xf]
  %v58 = vld [vmem:[%s1 + $0x8c] sm:$0xf]
  %v59 = vld [vmem:[%s1 + $0x90] sm:$0xf]
  %v60 = vld [vmem:[%s1 + $0x94] sm:$0xf]
  %v61 = vld [vmem:[%s1 + $0x98] sm:$0xf]
  %v62 = vld [vmem:[%s1 + $0x9c] sm:$0xf]
  %v63 = vld [vmem:[%s1 + $0xa0] sm:$0xf]
  %v64 = vld [vmem:[%s1 + $0xa4] sm:$0xf]
  %v65 = vld [vmem:[%s1 + $0xa8] sm:$0xf]
  %v66 = vld [vmem:[%s1 + $0xac] sm:$0xf]
  %v67 = vld [vmem:[%s1 + $0xb0] sm:$0xf]
  %v68 = vld [vmem:[%s1 + $0xb4] sm:$0xf]
  %v69 = vld [vmem:[%s1 + $0xb8] sm:$0xf]
  %v70 = vld [vmem:[%s1 + $0xbc] sm:$0xf]
  %v71 = vld [vmem:[%s1 + $0xc0] sm:$0xf]
  %v72 = vld [vmem:[%s1 + $0xc4] sm:$0xf]
  %v73 = vld [vmem:[%s1 + $0xc8] sm:$0xf]
  %v74 = vld [vmem:[%s1 + $0xcc] sm:$0xf]
  %v75 = vld [vmem:[%s1 + $0xd0] sm:$0xf]
  %v76 = vld [vmem:[%s1 + $0xd4] sm:$0xf]
  %v77 = vld [vmem:[%s1 + $0xd8] sm:$0xf]
  %v78 = vld [vmem:[%s1 + $0xdc] sm:$0xf]
  %v79 = vld [vmem:[%s1 + $0xe0] sm:$0xf]
  %v80 = vld [vmem:[%s1 + $0xe4] sm:$0xf]
  %v81 = vld [vmem:[%s1 + $0xe8] sm:$0xf]
  %v82 = vld [vmem:[%s1 + $0xec] sm:$0xf]
  %v83 = vld [vmem:[%s1 + $0xf0] sm:$0xf]
  %v84 = vld [vmem:[%s1 + $0xf4] sm:$0xf]
  %v85 = vld [vmem:[%s1 + $0xf8] sm:$0xf]
  %v86 = vld [vmem:[%s1 + $0xfc] sm:$0xf]
  %v87 = vld [vmem:[%s0] sm:$0x1]
  %v152 = vunpack.c.l.b16 %v23
  %v153 = vunpack.c.l.b16 %v24
  %v154 = vunpack.c.l.b16 %v25
  %v155 = vunpack.c.l.b16 %v26
  %v156 = vunpack.c.l.b16 %v27
  %v157 = vunpack.c.l.b16 %v28
  %v158 = vunpack.c.l.b16 %v29
  %v159 = vunpack.c.l.b16 %v30
  %v160 = vunpack.c.l.b16 %v31
  %v161 = vunpack.c.l.b16 %v32
  %v162 = vunpack.c.l.b16 %v33
  %v163 = vunpack.c.l.b16 %v34
  %v164 = vunpack.c.l.b16 %v35
  %v165 = vunpack.c.l.b16 %v36
  %v166 = vunpack.c.l.b16 %v37
  %v167 = vunpack.c.l.b16 %v38
  %v168 = vunpack.c.l.b16 %v39
  %v169 = vunpack.c.l.b16 %v40
  %v170 = vunpack.c.l.b16 %v41
  %v171 = vunpack.c.l.b16 %v42
  %v172 = vunpack.c.l.b16 %v43
  %v173 = vunpack.c.l.b16 %v44
  %v174 = vunpack.c.l.b16 %v45
  %v175 = vunpack.c.l.b16 %v46
  %v176 = vunpack.c.l.b16 %v47
  %v177 = vunpack.c.l.b16 %v48
  %v178 = vunpack.c.l.b16 %v49
  %v179 = vunpack.c.l.b16 %v50
  %v180 = vunpack.c.l.b16 %v51
  %v181 = vunpack.c.l.b16 %v52
  %v182 = vunpack.c.l.b16 %v53
  %v183 = vunpack.c.l.b16 %v54
  %v184 = vunpack.c.l.b16 %v55
  %v185 = vunpack.c.l.b16 %v56
  %v186 = vunpack.c.l.b16 %v57
  %v187 = vunpack.c.l.b16 %v58
  %v188 = vunpack.c.l.b16 %v59
  %v189 = vunpack.c.l.b16 %v60
  %v190 = vunpack.c.l.b16 %v61
  %v191 = vunpack.c.l.b16 %v62
  %v192 = vunpack.c.l.b16 %v63
  %v193 = vunpack.c.l.b16 %v64
  %v194 = vunpack.c.l.b16 %v65
  %v195 = vunpack.c.l.b16 %v66
  %v196 = vunpack.c.l.b16 %v67
  %v197 = vunpack.c.l.b16 %v68
  %v198 = vunpack.c.l.b16 %v69
  %v199 = vunpack.c.l.b16 %v70
  %v200 = vunpack.c.l.b16 %v71
  %v201 = vunpack.c.l.b16 %v72
  %v202 = vunpack.c.l.b16 %v73
  %v203 = vunpack.c.l.b16 %v74
  %v204 = vunpack.c.l.b16 %v75
  %v205 = vunpack.c.l.b16 %v76
  %v206 = vunpack.c.l.b16 %v77
  %v207 = vunpack.c.l.b16 %v78
  %v208 = vunpack.c.l.b16 %v79
  %v209 = vunpack.c.l.b16 %v80
  %v210 = vunpack.c.l.b16 %v81
  %v211 = vunpack.c.l.b16 %v82
  %v212 = vunpack.c.l.b16 %v83
  %v213 = vunpack.c.l.b16 %v84
  %v214 = vunpack.c.l.b16 %v85
  %v215 = vunpack.c.l.b16 %v86
  %v216 = vpack.c.b16 %v153, %v152
  %v217 = vpack.c.b16 %v155, %v154
  %v218 = vpack.c.b16 %v157, %v156
  %v219 = vpack.c.b16 %v159, %v158
  %v220 = vpack.c.b16 %v161, %v160
  %v221 = vpack.c.b16 %v163, %v162
  %v222 = vpack.c.b16 %v165, %v164
  %v223 = vpack.c.b16 %v167, %v166
  %v224 = vpack.c.b16 %v169, %v168
  %v225 = vpack.c.b16 %v171, %v170
  %v226 = vpack.c.b16 %v173, %v172
  %v227 = vpack.c.b16 %v175, %v174
  %v228 = vpack.c.b16 %v177, %v176
  %v229 = vpack.c.b16 %v179, %v178
  %v230 = vpack.c.b16 %v181, %v180
  %v231 = vpack.c.b16 %v183, %v182
  %v232 = vpack.c.b16 %v185, %v184
  %v233 = vpack.c.b16 %v187, %v186
  %v234 = vpack.c.b16 %v189, %v188
  %v235 = vpack.c.b16 %v191, %v190
  %v236 = vpack.c.b16 %v193, %v192
  %v237 = vpack.c.b16 %v195, %v194
  %v238 = vpack.c.b16 %v197, %v196
  %v239 = vpack.c.b16 %v199, %v198
  %v240 = vpack.c.b16 %v201, %v200
  %v241 = vpack.c.b16 %v203, %v202
  %v242 = vpack.c.b16 %v205, %v204
  %v243 = vpack.c.b16 %v207, %v206
  %v244 = vpack.c.b16 %v209, %v208
  %v245 = vpack.c.b16 %v211, %v210
  %v246 = vpack.c.b16 %v213, %v212
  %v247 = vpack.c.b16 %v215, %v214
  %vm248 = vcmask 15360
  %v250 = vsel %vm248, %v216, 0
  %v253 = vsel %vm248, %v217, 0
  %v256 = vsel %vm248, %v218, 0
  %v259 = vsel %vm248, %v219, 0
  %v262 = vsel %vm248, %v220, 0
  %v265 = vsel %vm248, %v221, 0
  %v268 = vsel %vm248, %v222, 0
  %v271 = vsel %vm248, %v223, 0
  %v274 = vsel %vm248, %v224, 0
  %v277 = vsel %vm248, %v225, 0
  %v280 = vsel %vm248, %v226, 0
  %v283 = vsel %vm248, %v227, 0
  %v286 = vsel %vm248, %v228, 0
  %v289 = vsel %vm248, %v229, 0
  %v292 = vsel %vm248, %v230, 0
  %v295 = vsel %vm248, %v231, 0
  %v298 = vsel %vm248, %v232, 0
  %v301 = vsel %vm248, %v233, 0
  %v304 = vsel %vm248, %v234, 0
  %v307 = vsel %vm248, %v235, 0
  %v310 = vsel %vm248, %v236, 0
  %v313 = vsel %vm248, %v237, 0
  %v316 = vsel %vm248, %v238, 0
  %v319 = vsel %vm248, %v239, 0
  %v322 = vsel %vm248, %v240, 0
  %v325 = vsel %vm248, %v241, 0
  %v328 = vsel %vm248, %v242, 0
  %v331 = vsel %vm248, %v243, 0
  %v334 = vsel %vm248, %v244, 0
  %v337 = vsel %vm248, %v245, 0
  %v340 = vsel %vm248, %v246, 0
  %v343 = vsel %vm248, %v247, 0
  %vm345 = vcmask 1040384
  %v347 = vsel %vm345, %v87, 0
  %349 = vmatprep.subr.bf16.mxu0 0
  %350 = vmatpush1.bf16.msra.mxu0 %v347
  %351 = vmatprep.subr.bf16.mxu0 0
  %352 = vmatpush1.bf16.msra.mxu0 0
  %353 = vmatprep.subr.bf16.mxu0 0
  %354 = vmatpush1.bf16.msra.mxu0 0
  %355 = vmatprep.subr.bf16.mxu0 0
  %356 = vmatpush1.bf16.msra.mxu0 0
  %357 = vmatprep.subr.bf16.mxu0 0
  %358 = vmatpush1.bf16.msra.mxu0 0
  %359 = vmatprep.subr.bf16.mxu0 0
  %360 = vmatpush1.bf16.msra.mxu0 0
  %361 = vmatprep.subr.bf16.mxu0 0
  %362 = vmatpush1.bf16.msra.mxu0 0
  %363 = vmatprep.subr.bf16.mxu0 0
  %364 = vmatpush1.bf16.msra.mxu0 0
  %365 = vmatprep.subr.bf16.mxu0 0
  %366 = vmatpush1.bf16.msra.mxu0 0
  %367 = vmatprep.subr.bf16.mxu0 0
  %368 = vmatpush1.bf16.msra.mxu0 0
  %369 = vmatprep.subr.bf16.mxu0 0
  %370 = vmatpush1.bf16.msra.mxu0 0
  %371 = vmatprep.subr.bf16.mxu0 0
  %372 = vmatpush1.bf16.msra.mxu0 0
  %373 = vmatprep.subr.bf16.mxu0 0
  %374 = vmatpush1.bf16.msra.mxu0 0
  %375 = vmatprep.subr.bf16.mxu0 0
  %376 = vmatpush1.bf16.msra.mxu0 0
  %377 = vmatprep.subr.bf16.mxu0 0
  %378 = vmatpush1.bf16.msra.mxu0 0
  %379 = vmatprep.subr.bf16.mxu0 0
  %380 = vmatpush1.bf16.msra.mxu0 0
  %381 = vmatprep.mubr.bf16.mxu0 0
  %382 = vmatmul.mubr.bf16.gmra.mrb[0].mxu0 %v250
  %v383 = vpop.f32.mrb[0].mxu0
  %v384 = vadd.f32 0.0, %v383
  %v385 = vpop.f32.mrb[0].mxu0
  %v386 = vpop.f32.mrb[0].mxu0
  %v387 = vadd.f32 0.0, %v386
  %v388 = vpop.f32.mrb[0].mxu0
  %389 = vmatprep.mubr.bf16.mxu0 0
  %390 = vmatmul.mubr.bf16.gmra.mrb[0].mxu0 %v253
  %v391 = vpop.f32.mrb[0].mxu0
  %v392 = vadd.f32 0.0, %v391
  %v393 = vpop.f32.mrb[0].mxu0
  %v394 = vpop.f32.mrb[0].mxu0
  %v395 = vadd.f32 0.0, %v394
  %v396 = vpop.f32.mrb[0].mxu0
  %397 = vmatprep.mubr.bf16.mxu0 0
  %398 = vmatmul.mubr.bf16.gmra.mrb[0].mxu0 %v256
  %v399 = vpop.f32.mrb[0].mxu0
  %v400 = vadd.f32 0.0, %v399
  %v401 = vpop.f32.mrb[0].mxu0
  %v402 = vpop.f32.mrb[0].mxu0
  %v403 = vadd.f32 0.0, %v402
  %v404 = vpop.f32.mrb[0].mxu0
  %405 = vmatprep.mubr.bf16.mxu0 0
  %406 = vmatmul.mubr.bf16.gmra.mrb[0].mxu0 %v259
  %v407 = vpop.f32.mrb[0].mxu0
  %v408 = vadd.f32 0.0, %v407
  %v409 = vpop.f32.mrb[0].mxu0
  %v410 = vpop.f32.mrb[0].mxu0
  %v411 = vadd.f32 0.0, %v410
  %v412 = vpop.f32.mrb[0].mxu0
  %413 = vmatprep.mubr.bf16.mxu0 0
  %414 = vmatmul.mubr.bf16.gmra.mrb[0].mxu0 %v262
  %v415 = vpop.f32.mrb[0].mxu0
  %v416 = vadd.f32 0.0, %v415
  %v417 = vpop.f32.mrb[0].mxu0
  %v418 = vpop.f32.mrb[0].mxu0
  %v419 = vadd.f32 0.0, %v418
  %v420 = vpop.f32.mrb[0].mxu0
  %421 = vmatprep.mubr.bf16.mxu0 0
  %422 = vmatmul.mubr.bf16.gmra.mrb[0].mxu0 %v265
  %v423 = vpop.f32.mrb[0].mxu0
  %v424 = vadd.f32 0.0, %v423
  %v425 = vpop.f32.mrb[0].mxu0
  %v426 = vpop.f32.mrb[0].mxu0
  %v427 = vadd.f32 0.0, %v426
  %v428 = vpop.f32.mrb[0].mxu0
  %429 = vmatprep.mubr.bf16.mxu0 0
  %430 = vmatmul.mubr.bf16.gmra.mrb[0].mxu0 %v268
  %v431 = vpop.f32.mrb[0].mxu0
  %v432 = vadd.f32 0.0, %v431
  %v433 = vpop.f32.mrb[0].mxu0
  %v434 = vpop.f32.mrb[0].mxu0
  %v435 = vadd.f32 0.0, %v434
  %v436 = vpop.f32.mrb[0].mxu0
  %437 = vmatprep.mubr.bf16.mxu0 0
  %438 = vmatmul.mubr.bf16.gmra.mrb[0].mxu0 %v271
  %v439 = vpop.f32.mrb[0].mxu0
  %v440 = vadd.f32 0.0, %v439
  %v441 = vpop.f32.mrb[0].mxu0
  %v442 = vpop.f32.mrb[0].mxu0
  %v443 = vadd.f32 0.0, %v442
  %v444 = vpop.f32.mrb[0].mxu0
  %445 = vmatprep.mubr.bf16.mxu0 0
  %446 = vmatmul.mubr.bf16.gmra.mrb[0].mxu0 %v274
  %v447 = vpop.f32.mrb[0].mxu0
  %v448 = vadd.f32 0.0, %v447
  %v449 = vpop.f32.mrb[0].mxu0
  %v450 = vpop.f32.mrb[0].mxu0
  %v451 = vadd.f32 0.0, %v450
  %v452 = vpop.f32.mrb[0].mxu0
  %453 = vmatprep.mubr.bf16.mxu0 0
  %454 = vmatmul.mubr.bf16.gmra.mrb[0].mxu0 %v277
  %v455 = vpop.f32.mrb[0].mxu0
  %v456 = vadd.f32 0.0, %v455
  %v457 = vpop.f32.mrb[0].mxu0
  %v458 = vpop.f32.mrb[0].mxu0
  %v459 = vadd.f32 0.0, %v458
  %v460 = vpop.f32.mrb[0].mxu0
  %461 = vmatprep.mubr.bf16.mxu0 0
  %462 = vmatmul.mubr.bf16.gmra.mrb[0].mxu0 %v280
  %v463 = vpop.f32.mrb[0].mxu0
  %v464 = vadd.f32 0.0, %v463
  %v465 = vpop.f32.mrb[0].mxu0
  %v466 = vpop.f32.mrb[0].mxu0
  %v467 = vadd.f32 0.0, %v466
  %v468 = vpop.f32.mrb[0].mxu0
  %469 = vmatprep.mubr.bf16.mxu0 0
  %470 = vmatmul.mubr.bf16.gmra.mrb[0].mxu0 %v283
  %v471 = vpop.f32.mrb[0].mxu0
  %v472 = vadd.f32 0.0, %v471
  %v473 = vpop.f32.mrb[0].mxu0
  %v474 = vpop.f32.mrb[0].mxu0
  %v475 = vadd.f32 0.0, %v474
  %v476 = vpop.f32.mrb[0].mxu0
  %477 = vmatprep.mubr.bf16.mxu0 0
  %478 = vmatmul.mubr.bf16.gmra.mrb[0].mxu0 %v286
  %v479 = vpop.f32.mrb[0].mxu0
  %v480 = vadd.f32 0.0, %v479
  %v481 = vpop.f32.mrb[0].mxu0
  %v482 = vpop.f32.mrb[0].mxu0
  %v483 = vadd.f32 0.0, %v482
  %v484 = vpop.f32.mrb[0].mxu0
  %485 = vmatprep.mubr.bf16.mxu0 0
  %486 = vmatmul.mubr.bf16.gmra.mrb[0].mxu0 %v289
  %v487 = vpop.f32.mrb[0].mxu0
  %v488 = vadd.f32 0.0, %v487
  %v489 = vpop.f32.mrb[0].mxu0
  %v490 = vpop.f32.mrb[0].mxu0
  %v491 = vadd.f32 0.0, %v490
  %v492 = vpop.f32.mrb[0].mxu0
  %493 = vmatprep.mubr.bf16.mxu0 0
  %494 = vmatmul.mubr.bf16.gmra.mrb[0].mxu0 %v292
  %v495 = vpop.f32.mrb[0].mxu0
  %v496 = vadd.f32 0.0, %v495
  %v497 = vpop.f32.mrb[0].mxu0
  %v498 = vpop.f32.mrb[0].mxu0
  %v499 = vadd.f32 0.0, %v498
  %v500 = vpop.f32.mrb[0].mxu0
  %501 = vmatprep.mubr.bf16.mxu0 0
  %502 = vmatmul.mubr.bf16.gmra.mrb[0].mxu0 %v295
  %v503 = vpop.f32.mrb[0].mxu0
  %v504 = vadd.f32 0.0, %v503
  %v505 = vpop.f32.mrb[0].mxu0
  %v506 = vpop.f32.mrb[0].mxu0
  %v507 = vadd.f32 0.0, %v506
  %v508 = vpop.f32.mrb[0].mxu0
  %509 = vmatprep.mubr.bf16.mxu0 0
  %510 = vmatmul.mubr.bf16.gmra.mrb[0].mxu0 %v298
  %v511 = vpop.f32.mrb[0].mxu0
  %v512 = vadd.f32 0.0, %v511
  %v513 = vpop.f32.mrb[0].mxu0
  %v514 = vpop.f32.mrb[0].mxu0
  %v515 = vadd.f32 0.0, %v514
  %v516 = vpop.f32.mrb[0].mxu0
  %517 = vmatprep.mubr.bf16.mxu0 0
  %518 = vmatmul.mubr.bf16.gmra.mrb[0].mxu0 %v301
  %v519 = vpop.f32.mrb[0].mxu0
  %v520 = vadd.f32 0.0, %v519
  %v521 = vpop.f32.mrb[0].mxu0
  %v522 = vpop.f32.mrb[0].mxu0
  %v523 = vadd.f32 0.0, %v522
  %v524 = vpop.f32.mrb[0].mxu0
  %525 = vmatprep.mubr.bf16.mxu0 0
  %526 = vmatmul.mubr.bf16.gmra.mrb[0].mxu0 %v304
  %v527 = vpop.f32.mrb[0].mxu0
  %v528 = vadd.f32 0.0, %v527
  %v529 = vpop.f32.mrb[0].mxu0
  %v530 = vpop.f32.mrb[0].mxu0
  %v531 = vadd.f32 0.0, %v530
  %v532 = vpop.f32.mrb[0].mxu0
  %533 = vmatprep.mubr.bf16.mxu0 0
  %534 = vmatmul.mubr.bf16.gmra.mrb[0].mxu0 %v307
  %v535 = vpop.f32.mrb[0].mxu0
  %v536 = vadd.f32 0.0, %v535
  %v537 = vpop.f32.mrb[0].mxu0
  %v538 = vpop.f32.mrb[0].mxu0
  %v539 = vadd.f32 0.0, %v538
  %v540 = vpop.f32.mrb[0].mxu0
  %541 = vmatprep.mubr.bf16.mxu0 0
  %542 = vmatmul.mubr.bf16.gmra.mrb[0].mxu0 %v310
  %v543 = vpop.f32.mrb[0].mxu0
  %v544 = vadd.f32 0.0, %v543
  %v545 = vpop.f32.mrb[0].mxu0
  %v546 = vpop.f32.mrb[0].mxu0
  %v547 = vadd.f32 0.0, %v546
  %v548 = vpop.f32.mrb[0].mxu0
  %549 = vmatprep.mubr.bf16.mxu0 0
  %550 = vmatmul.mubr.bf16.gmra.mrb[0].mxu0 %v313
  %v551 = vpop.f32.mrb[0].mxu0
  %v552 = vadd.f32 0.0, %v551
  %v553 = vpop.f32.mrb[0].mxu0
  %v554 = vpop.f32.mrb[0].mxu0
  %v555 = vadd.f32 0.0, %v554
  %v556 = vpop.f32.mrb[0].mxu0
  %557 = vmatprep.mubr.bf16.mxu0 0
  %558 = vmatmul.mubr.bf16.gmra.mrb[0].mxu0 %v316
  %v559 = vpop.f32.mrb[0].mxu0
  %v560 = vadd.f32 0.0, %v559
  %v561 = vpop.f32.mrb[0].mxu0
  %v562 = vpop.f32.mrb[0].mxu0
  %v563 = vadd.f32 0.0, %v562
  %v564 = vpop.f32.mrb[0].mxu0
  %565 = vmatprep.mubr.bf16.mxu0 0
  %566 = vmatmul.mubr.bf16.gmra.mrb[0].mxu0 %v319
  %v567 = vpop.f32.mrb[0].mxu0
  %v568 = vadd.f32 0.0, %v567
  %v569 = vpop.f32.mrb[0].mxu0
  %v570 = vpop.f32.mrb[0].mxu0
  %v571 = vadd.f32 0.0, %v570
  %v572 = vpop.f32.mrb[0].mxu0
  %573 = vmatprep.mubr.bf16.mxu0 0
  %574 = vmatmul.mubr.bf16.gmra.mrb[0].mxu0 %v322
  %v575 = vpop.f32.mrb[0].mxu0
  %v576 = vadd.f32 0.0, %v575
  %v577 = vpop.f32.mrb[0].mxu0
  %v578 = vpop.f32.mrb[0].mxu0
  %v579 = vadd.f32 0.0, %v578
  %v580 = vpop.f32.mrb[0].mxu0
  %581 = vmatprep.mubr.bf16.mxu0 0
  %582 = vmatmul.mubr.bf16.gmra.mrb[0].mxu0 %v325
  %v583 = vpop.f32.mrb[0].mxu0
  %v584 = vadd.f32 0.0, %v583
  %v585 = vpop.f32.mrb[0].mxu0
  %v586 = vpop.f32.mrb[0].mxu0
  %v587 = vadd.f32 0.0, %v586
  %v588 = vpop.f32.mrb[0].mxu0
  %589 = vmatprep.mubr.bf16.mxu0 0
  %590 = vmatmul.mubr.bf16.gmra.mrb[0].mxu0 %v328
  %v591 = vpop.f32.mrb[0].mxu0
  %v592 = vadd.f32 0.0, %v591
  %v593 = vpop.f32.mrb[0].mxu0
  %v594 = vpop.f32.mrb[0].mxu0
  %v595 = vadd.f32 0.0, %v594
  %v596 = vpop.f32.mrb[0].mxu0
  %597 = vmatprep.mubr.bf16.mxu0 0
  %598 = vmatmul.mubr.bf16.gmra.mrb[0].mxu0 %v331
  %v599 = vpop.f32.mrb[0].mxu0
  %v600 = vadd.f32 0.0, %v599
  %v601 = vpop.f32.mrb[0].mxu0
  %v602 = vpop.f32.mrb[0].mxu0
  %v603 = vadd.f32 0.0, %v602
  %v604 = vpop.f32.mrb[0].mxu0
  %605 = vmatprep.mubr.bf16.mxu0 0
  %606 = vmatmul.mubr.bf16.gmra.mrb[0].mxu0 %v334
  %v607 = vpop.f32.mrb[0].mxu0
  %v608 = vadd.f32 0.0, %v607
  %v609 = vpop.f32.mrb[0].mxu0
  %v610 = vpop.f32.mrb[0].mxu0
  %v611 = vadd.f32 0.0, %v610
  %v612 = vpop.f32.mrb[0].mxu0
  %613 = vmatprep.mubr.bf16.mxu0 0
  %614 = vmatmul.mubr.bf16.gmra.mrb[0].mxu0 %v337
  %v615 = vpop.f32.mrb[0].mxu0
  %v616 = vadd.f32 0.0, %v615
  %v617 = vpop.f32.mrb[0].mxu0
  %v618 = vpop.f32.mrb[0].mxu0
  %v619 = vadd.f32 0.0, %v618
  %v620 = vpop.f32.mrb[0].mxu0
  %621 = vmatprep.mubr.bf16.mxu0 0
  %622 = vmatmul.mubr.bf16.gmra.mrb[0].mxu0 %v340
  %v623 = vpop.f32.mrb[0].mxu0
  %v624 = vadd.f32 0.0, %v623
  %v625 = vpop.f32.mrb[0].mxu0
  %v626 = vpop.f32.mrb[0].mxu0
  %v627 = vadd.f32 0.0, %v626
  %v628 = vpop.f32.mrb[0].mxu0
  %629 = vmatprep.mubr.bf16.mxu0 0
  %630 = vmatmul.mubr.bf16.gmra.mrb[0].mxu0 %v343
  %v631 = vpop.f32.mrb[0].mxu0
  %v632 = vadd.f32 0.0, %v631
  %v633 = vpop.f32.mrb[0].mxu0
  %v634 = vpop.f32.mrb[0].mxu0
  %v635 = vadd.f32 0.0, %v634
  %v636 = vpop.f32.mrb[0].mxu0
  %637 = vdwg.mxu0
  %v638 = vpack.c.bf16 %v387, %v384
  %v639 = vpack.c.bf16 %v395, %v392
  %v640 = vpack.c.bf16 %v403, %v400
  %v641 = vpack.c.bf16 %v411, %v408
  %v642 = vpack.c.bf16 %v419, %v416
  %v643 = vpack.c.bf16 %v427, %v424
  %v644 = vpack.c.bf16 %v435, %v432
  %v645 = vpack.c.bf16 %v443, %v440
  %v646 = vpack.c.bf16 %v451, %v448
  %v647 = vpack.c.bf16 %v459, %v456
  %v648 = vpack.c.bf16 %v467, %v464
  %v649 = vpack.c.bf16 %v475, %v472
  %v650 = vpack.c.bf16 %v483, %v480
  %v651 = vpack.c.bf16 %v491, %v488
  %v652 = vpack.c.bf16 %v499, %v496
  %v653 = vpack.c.bf16 %v507, %v504
  %v654 = vpack.c.bf16 %v515, %v512
  %v655 = vpack.c.bf16 %v523, %v520
  %v656 = vpack.c.bf16 %v531, %v528
  %v657 = vpack.c.bf16 %v539, %v536
  %v658 = vpack.c.bf16 %v547, %v544
  %v659 = vpack.c.bf16 %v555, %v552
  %v660 = vpack.c.bf16 %v563, %v560
  %v661 = vpack.c.bf16 %v571, %v568
  %v662 = vpack.c.bf16 %v579, %v576
  %v663 = vpack.c.bf16 %v587, %v584
  %v664 = vpack.c.bf16 %v595, %v592
  %v665 = vpack.c.bf16 %v603, %v600
  %v666 = vpack.c.bf16 %v611, %v608
  %v667 = vpack.c.bf16 %v619, %v616
  %v668 = vpack.c.bf16 %v627, %v624
  %v669 = vpack.c.bf16 %v635, %v632
  %v670 = vld [vmem:[%s2] sm:$0xf]
  %v671 = vld [vmem:[%s2 + $0x4] sm:$0xf]
  %v672 = vld [vmem:[%s2 + $0x8] sm:$0xf]
  %v673 = vld [vmem:[%s2 + $0xc] sm:$0xf]
  %v674 = vld [vmem:[%s2 + $0x10] sm:$0xf]
  %v675 = vld [vmem:[%s2 + $0x14] sm:$0xf]
  %v676 = vld [vmem:[%s2 + $0x18] sm:$0xf]
  %v677 = vld [vmem:[%s2 + $0x1c] sm:$0xf]
  %v678 = vld [vmem:[%s2 + $0x20] sm:$0xf]
  %v679 = vld [vmem:[%s2 + $0x24] sm:$0xf]
  %v680 = vld [vmem:[%s2 + $0x28] sm:$0xf]
  %v681 = vld [vmem:[%s2 + $0x2c] sm:$0xf]
  %v682 = vld [vmem:[%s2 + $0x30] sm:$0xf]
  %v683 = vld [vmem:[%s2 + $0x34] sm:$0xf]
  %v684 = vld [vmem:[%s2 + $0x38] sm:$0xf]
  %v685 = vld [vmem:[%s2 + $0x3c] sm:$0xf]
  %v686 = vld [vmem:[%s2 + $0x40] sm:$0xf]
  %v687 = vld [vmem:[%s2 + $0x44] sm:$0xf]
  %v688 = vld [vmem:[%s2 + $0x48] sm:$0xf]
  %v689 = vld [vmem:[%s2 + $0x4c] sm:$0xf]
  %v690 = vld [vmem:[%s2 + $0x50] sm:$0xf]
  %v691 = vld [vmem:[%s2 + $0x54] sm:$0xf]
  %v692 = vld [vmem:[%s2 + $0x58] sm:$0xf]
  %v693 = vld [vmem:[%s2 + $0x5c] sm:$0xf]
  %v694 = vld [vmem:[%s2 + $0x60] sm:$0xf]
  %v695 = vld [vmem:[%s2 + $0x64] sm:$0xf]
  %v696 = vld [vmem:[%s2 + $0x68] sm:$0xf]
  %v697 = vld [vmem:[%s2 + $0x6c] sm:$0xf]
  %v698 = vld [vmem:[%s2 + $0x70] sm:$0xf]
  %v699 = vld [vmem:[%s2 + $0x74] sm:$0xf]
  %v700 = vld [vmem:[%s2 + $0x78] sm:$0xf]
  %v701 = vld [vmem:[%s2 + $0x7c] sm:$0xf]
  %v702 = vld [vmem:[%s2 + $0x80] sm:$0xf]
  %v703 = vld [vmem:[%s2 + $0x84] sm:$0xf]
  %v704 = vld [vmem:[%s2 + $0x88] sm:$0xf]
  %v705 = vld [vmem:[%s2 + $0x8c] sm:$0xf]
  %v706 = vld [vmem:[%s2 + $0x90] sm:$0xf]
  %v707 = vld [vmem:[%s2 + $0x94] sm:$0xf]
  %v708 = vld [vmem:[%s2 + $0x98] sm:$0xf]
  %v709 = vld [vmem:[%s2 + $0x9c] sm:$0xf]
  %v710 = vld [vmem:[%s2 + $0xa0] sm:$0xf]
  %v711 = vld [vmem:[%s2 + $0xa4] sm:$0xf]
  %v712 = vld [vmem:[%s2 + $0xa8] sm:$0xf]
  %v713 = vld [vmem:[%s2 + $0xac] sm:$0xf]
  %v714 = vld [vmem:[%s2 + $0xb0] sm:$0xf]
  %v715 = vld [vmem:[%s2 + $0xb4] sm:$0xf]
  %v716 = vld [vmem:[%s2 + $0xb8] sm:$0xf]
  %v717 = vld [vmem:[%s2 + $0xbc] sm:$0xf]
  %v718 = vld [vmem:[%s2 + $0xc0] sm:$0xf]
  %v719 = vld [vmem:[%s2 + $0xc4] sm:$0xf]
  %v720 = vld [vmem:[%s2 + $0xc8] sm:$0xf]
  %v721 = vld [vmem:[%s2 + $0xcc] sm:$0xf]
  %v722 = vld [vmem:[%s2 + $0xd0] sm:$0xf]
  %v723 = vld [vmem:[%s2 + $0xd4] sm:$0xf]
  %v724 = vld [vmem:[%s2 + $0xd8] sm:$0xf]
  %v725 = vld [vmem:[%s2 + $0xdc] sm:$0xf]
  %v726 = vld [vmem:[%s2 + $0xe0] sm:$0xf]
  %v727 = vld [vmem:[%s2 + $0xe4] sm:$0xf]
  %v728 = vld [vmem:[%s2 + $0xe8] sm:$0xf]
  %v729 = vld [vmem:[%s2 + $0xec] sm:$0xf]
  %v730 = vld [vmem:[%s2 + $0xf0] sm:$0xf]
  %v731 = vld [vmem:[%s2 + $0xf4] sm:$0xf]
  %v732 = vld [vmem:[%s2 + $0xf8] sm:$0xf]
  %v733 = vld [vmem:[%s2 + $0xfc] sm:$0xf]
  %735 = vset.pattern.permute.xlu0 0
  %736 = vperm.xlu0 %735, %v670
  %v737 = vpop.permute.xlu0 %736
  %v740 = vunpack.c.l.s4 839922192
  %v741 = vunpack.c.0.s8 %v740
  %v742 = vlaneseq
  %v743 = vshrl.u32 %v742, 7
  %v744 = vsub.s32 %v741, %v743
  %v745 = vrot.slane %v737, %v744
  %747 = vset.pattern.permute.xlu0 0
  %748 = vperm.xlu0 %747, %v671
  %v749 = vpop.permute.xlu0 %748
  %v752 = vunpack.c.l.s4 839922192
  %v753 = vunpack.c.0.s8 %v752
  %v754 = vlaneseq
  %v755 = vshrl.u32 %v754, 7
  %v756 = vsub.s32 %v753, %v755
  %v757 = vrot.slane %v749, %v756
  %759 = vset.pattern.permute.xlu0 0
  %760 = vperm.xlu0 %759, %v672
  %v761 = vpop.permute.xlu0 %760
  %v764 = vunpack.c.l.s4 839922192
  %v765 = vunpack.c.0.s8 %v764
  %v766 = vlaneseq
  %v767 = vshrl.u32 %v766, 7
  %v768 = vsub.s32 %v765, %v767
  %v769 = vrot.slane %v761, %v768
  %771 = vset.pattern.permute.xlu0 0
  %772 = vperm.xlu0 %771, %v673
  %v773 = vpop.permute.xlu0 %772
  %v776 = vunpack.c.l.s4 839922192
  %v777 = vunpack.c.0.s8 %v776
  %v778 = vlaneseq
  %v779 = vshrl.u32 %v778, 7
  %v780 = vsub.s32 %v777, %v779
  %v781 = vrot.slane %v773, %v780
  %783 = vset.pattern.permute.xlu0 0
  %784 = vperm.xlu0 %783, %v674
  %v785 = vpop.permute.xlu0 %784
  %v788 = vunpack.c.l.s4 839922192
  %v789 = vunpack.c.0.s8 %v788
  %v790 = vlaneseq
  %v791 = vshrl.u32 %v790, 7
  %v792 = vsub.s32 %v789, %v791
  %v793 = vrot.slane %v785, %v792
  %795 = vset.pattern.permute.xlu0 0
  %796 = vperm.xlu0 %795, %v675
  %v797 = vpop.permute.xlu0 %796
  %v800 = vunpack.c.l.s4 839922192
  %v801 = vunpack.c.0.s8 %v800
  %v802 = vlaneseq
  %v803 = vshrl.u32 %v802, 7
  %v804 = vsub.s32 %v801, %v803
  %v805 = vrot.slane %v797, %v804
  %807 = vset.pattern.permute.xlu0 0
  %808 = vperm.xlu0 %807, %v676
  %v809 = vpop.permute.xlu0 %808
  %v812 = vunpack.c.l.s4 839922192
  %v813 = vunpack.c.0.s8 %v812
  %v814 = vlaneseq
  %v815 = vshrl.u32 %v814, 7
  %v816 = vsub.s32 %v813, %v815
  %v817 = vrot.slane %v809, %v816
  %819 = vset.pattern.permute.xlu0 0
  %820 = vperm.xlu0 %819, %v677
  %v821 = vpop.permute.xlu0 %820
  %v824 = vunpack.c.l.s4 839922192
  %v825 = vunpack.c.0.s8 %v824
  %v826 = vlaneseq
  %v827 = vshrl.u32 %v826, 7
  %v828 = vsub.s32 %v825, %v827
  %v829 = vrot.slane %v821, %v828
  %831 = vset.pattern.permute.xlu0 0
  %832 = vperm.xlu0 %831, %v678
  %v833 = vpop.permute.xlu0 %832
  %v836 = vunpack.c.l.s4 839922192
  %v837 = vunpack.c.0.s8 %v836
  %v838 = vlaneseq
  %v839 = vshrl.u32 %v838, 7
  %v840 = vsub.s32 %v837, %v839
  %v841 = vrot.slane %v833, %v840
  %843 = vset.pattern.permute.xlu0 0
  %844 = vperm.xlu0 %843, %v679
  %v845 = vpop.permute.xlu0 %844
  %v848 = vunpack.c.l.s4 839922192
  %v849 = vunpack.c.0.s8 %v848
  %v850 = vlaneseq
  %v851 = vshrl.u32 %v850, 7
  %v852 = vsub.s32 %v849, %v851
  %v853 = vrot.slane %v845, %v852
  %855 = vset.pattern.permute.xlu0 0
  %856 = vperm.xlu0 %855, %v680
  %v857 = vpop.permute.xlu0 %856
  %v860 = vunpack.c.l.s4 839922192
  %v861 = vunpack.c.0.s8 %v860
  %v862 = vlaneseq
  %v863 = vshrl.u32 %v862, 7
  %v864 = vsub.s32 %v861, %v863
  %v865 = vrot.slane %v857, %v864
  %867 = vset.pattern.permute.xlu0 0
  %868 = vperm.xlu0 %867, %v681
  %v869 = vpop.permute.xlu0 %868
  %v872 = vunpack.c.l.s4 839922192
  %v873 = vunpack.c.0.s8 %v872
  %v874 = vlaneseq
  %v875 = vshrl.u32 %v874, 7
  %v876 = vsub.s32 %v873, %v875
  %v877 = vrot.slane %v869, %v876
  %879 = vset.pattern.permute.xlu0 0
  %880 = vperm.xlu0 %879, %v682
  %v881 = vpop.permute.xlu0 %880
  %v884 = vunpack.c.l.s4 839922192
  %v885 = vunpack.c.0.s8 %v884
  %v886 = vlaneseq
  %v887 = vshrl.u32 %v886, 7
  %v888 = vsub.s32 %v885, %v887
  %v889 = vrot.slane %v881, %v888
  %891 = vset.pattern.permute.xlu0 0
  %892 = vperm.xlu0 %891, %v683
  %v893 = vpop.permute.xlu0 %892
  %v896 = vunpack.c.l.s4 839922192
  %v897 = vunpack.c.0.s8 %v896
  %v898 = vlaneseq
  %v899 = vshrl.u32 %v898, 7
  %v900 = vsub.s32 %v897, %v899
  %v901 = vrot.slane %v893, %v900
  %903 = vset.pattern.permute.xlu0 0
  %904 = vperm.xlu0 %903, %v684
  %v905 = vpop.permute.xlu0 %904
  %v908 = vunpack.c.l.s4 839922192
  %v909 = vunpack.c.0.s8 %v908
  %v910 = vlaneseq
  %v911 = vshrl.u32 %v910, 7
  %v912 = vsub.s32 %v909, %v911
  %v913 = vrot.slane %v905, %v912
  %915 = vset.pattern.permute.xlu0 0
  %916 = vperm.xlu0 %915, %v685
  %v917 = vpop.permute.xlu0 %916
  %v920 = vunpack.c.l.s4 839922192
  %v921 = vunpack.c.0.s8 %v920
  %v922 = vlaneseq
  %v923 = vshrl.u32 %v922, 7
  %v924 = vsub.s32 %v921, %v923
  %v925 = vrot.slane %v917, %v924
  %927 = vset.pattern.permute.xlu0 0
  %928 = vperm.xlu0 %927, %v686
  %v929 = vpop.permute.xlu0 %928
  %v932 = vunpack.c.l.s4 839922192
  %v933 = vunpack.c.0.s8 %v932
  %v934 = vlaneseq
  %v935 = vshrl.u32 %v934, 7
  %v936 = vsub.s32 %v933, %v935
  %v937 = vrot.slane %v929, %v936
  %939 = vset.pattern.permute.xlu0 0
  %940 = vperm.xlu0 %939, %v687
  %v941 = vpop.permute.xlu0 %940
  %v944 = vunpack.c.l.s4 839922192
  %v945 = vunpack.c.0.s8 %v944
  %v946 = vlaneseq
  %v947 = vshrl.u32 %v946, 7
  %v948 = vsub.s32 %v945, %v947
  %v949 = vrot.slane %v941, %v948
  %951 = vset.pattern.permute.xlu0 0
  %952 = vperm.xlu0 %951, %v688
  %v953 = vpop.permute.xlu0 %952
  %v956 = vunpack.c.l.s4 839922192
  %v957 = vunpack.c.0.s8 %v956
  %v958 = vlaneseq
  %v959 = vshrl.u32 %v958, 7
  %v960 = vsub.s32 %v957, %v959
  %v961 = vrot.slane %v953, %v960
  %963 = vset.pattern.permute.xlu0 0
  %964 = vperm.xlu0 %963, %v689
  %v965 = vpop.permute.xlu0 %964
  %v968 = vunpack.c.l.s4 839922192
  %v969 = vunpack.c.0.s8 %v968
  %v970 = vlaneseq
  %v971 = vshrl.u32 %v970, 7
  %v972 = vsub.s32 %v969, %v971
  %v973 = vrot.slane %v965, %v972
  %975 = vset.pattern.permute.xlu0 0
  %976 = vperm.xlu0 %975, %v690
  %v977 = vpop.permute.xlu0 %976
  %v980 = vunpack.c.l.s4 839922192
  %v981 = vunpack.c.0.s8 %v980
  %v982 = vlaneseq
  %v983 = vshrl.u32 %v982, 7
  %v984 = vsub.s32 %v981, %v983
  %v985 = vrot.slane %v977, %v984
  %987 = vset.pattern.permute.xlu0 0
  %988 = vperm.xlu0 %987, %v691
  %v989 = vpop.permute.xlu0 %988
  %v992 = vunpack.c.l.s4 839922192
  %v993 = vunpack.c.0.s8 %v992
  %v994 = vlaneseq
  %v995 = vshrl.u32 %v994, 7
  %v996 = vsub.s32 %v993, %v995
  %v997 = vrot.slane %v989, %v996
  %999 = vset.pattern.permute.xlu0 0
  %1000 = vperm.xlu0 %999, %v692
  %v1001 = vpop.permute.xlu0 %1000
  %v1004 = vunpack.c.l.s4 839922192
  %v1005 = vunpack.c.0.s8 %v1004
  %v1006 = vlaneseq
  %v1007 = vshrl.u32 %v1006, 7
  %v1008 = vsub.s32 %v1005, %v1007
  %v1009 = vrot.slane %v1001, %v1008
  %1011 = vset.pattern.permute.xlu0 0
  %1012 = vperm.xlu0 %1011, %v693
  %v1013 = vpop.permute.xlu0 %1012
  %v1016 = vunpack.c.l.s4 839922192
  %v1017 = vunpack.c.0.s8 %v1016
  %v1018 = vlaneseq
  %v1019 = vshrl.u32 %v1018, 7
  %v1020 = vsub.s32 %v1017, %v1019
  %v1021 = vrot.slane %v1013, %v1020
  %1023 = vset.pattern.permute.xlu0 0
  %1024 = vperm.xlu0 %1023, %v694
  %v1025 = vpop.permute.xlu0 %1024
  %v1028 = vunpack.c.l.s4 839922192
  %v1029 = vunpack.c.0.s8 %v1028
  %v1030 = vlaneseq
  %v1031 = vshrl.u32 %v1030, 7
  %v1032 = vsub.s32 %v1029, %v1031
  %v1033 = vrot.slane %v1025, %v1032
  %1035 = vset.pattern.permute.xlu0 0
  %1036 = vperm.xlu0 %1035, %v695
  %v1037 = vpop.permute.xlu0 %1036
  %v1040 = vunpack.c.l.s4 839922192
  %v1041 = vunpack.c.0.s8 %v1040
  %v1042 = vlaneseq
  %v1043 = vshrl.u32 %v1042, 7
  %v1044 = vsub.s32 %v1041, %v1043
  %v1045 = vrot.slane %v1037, %v1044
  %1047 = vset.pattern.permute.xlu0 0
  %1048 = vperm.xlu0 %1047, %v696
  %v1049 = vpop.permute.xlu0 %1048
  %v1052 = vunpack.c.l.s4 839922192
  %v1053 = vunpack.c.0.s8 %v1052
  %v1054 = vlaneseq
  %v1055 = vshrl.u32 %v1054, 7
  %v1056 = vsub.s32 %v1053, %v1055
  %v1057 = vrot.slane %v1049, %v1056
  %1059 = vset.pattern.permute.xlu0 0
  %1060 = vperm.xlu0 %1059, %v697
  %v1061 = vpop.permute.xlu0 %1060
  %v1064 = vunpack.c.l.s4 839922192
  %v1065 = vunpack.c.0.s8 %v1064
  %v1066 = vlaneseq
  %v1067 = vshrl.u32 %v1066, 7
  %v1068 = vsub.s32 %v1065, %v1067
  %v1069 = vrot.slane %v1061, %v1068
  %1071 = vset.pattern.permute.xlu0 0
  %1072 = vperm.xlu0 %1071, %v698
  %v1073 = vpop.permute.xlu0 %1072
  %v1076 = vunpack.c.l.s4 839922192
  %v1077 = vunpack.c.0.s8 %v1076
  %v1078 = vlaneseq
  %v1079 = vshrl.u32 %v1078, 7
  %v1080 = vsub.s32 %v1077, %v1079
  %v1081 = vrot.slane %v1073, %v1080
  %1083 = vset.pattern.permute.xlu0 0
  %1084 = vperm.xlu0 %1083, %v699
  %v1085 = vpop.permute.xlu0 %1084
  %v1088 = vunpack.c.l.s4 839922192
  %v1089 = vunpack.c.0.s8 %v1088
  %v1090 = vlaneseq
  %v1091 = vshrl.u32 %v1090, 7
  %v1092 = vsub.s32 %v1089, %v1091
  %v1093 = vrot.slane %v1085, %v1092
  %1095 = vset.pattern.permute.xlu0 0
  %1096 = vperm.xlu0 %1095, %v700
  %v1097 = vpop.permute.xlu0 %1096
  %v1100 = vunpack.c.l.s4 839922192
  %v1101 = vunpack.c.0.s8 %v1100
  %v1102 = vlaneseq
  %v1103 = vshrl.u32 %v1102, 7
  %v1104 = vsub.s32 %v1101, %v1103
  %v1105 = vrot.slane %v1097, %v1104
  %1107 = vset.pattern.permute.xlu0 0
  %1108 = vperm.xlu0 %1107, %v701
  %v1109 = vpop.permute.xlu0 %1108
  %v1112 = vunpack.c.l.s4 839922192
  %v1113 = vunpack.c.0.s8 %v1112
  %v1114 = vlaneseq
  %v1115 = vshrl.u32 %v1114, 7
  %v1116 = vsub.s32 %v1113, %v1115
  %v1117 = vrot.slane %v1109, %v1116
  %1119 = vset.pattern.permute.xlu0 0
  %1120 = vperm.xlu0 %1119, %v702
  %v1121 = vpop.permute.xlu0 %1120
  %v1124 = vunpack.c.l.s4 839922192
  %v1125 = vunpack.c.0.s8 %v1124
  %v1126 = vlaneseq
  %v1127 = vshrl.u32 %v1126, 7
  %v1128 = vsub.s32 %v1125, %v1127
  %v1129 = vrot.slane %v1121, %v1128
  %1131 = vset.pattern.permute.xlu0 0
  %1132 = vperm.xlu0 %1131, %v703
  %v1133 = vpop.permute.xlu0 %1132
  %v1136 = vunpack.c.l.s4 839922192
  %v1137 = vunpack.c.0.s8 %v1136
  %v1138 = vlaneseq
  %v1139 = vshrl.u32 %v1138, 7
  %v1140 = vsub.s32 %v1137, %v1139
  %v1141 = vrot.slane %v1133, %v1140
  %1143 = vset.pattern.permute.xlu0 0
  %1144 = vperm.xlu0 %1143, %v704
  %v1145 = vpop.permute.xlu0 %1144
  %v1148 = vunpack.c.l.s4 839922192
  %v1149 = vunpack.c.0.s8 %v1148
  %v1150 = vlaneseq
  %v1151 = vshrl.u32 %v1150, 7
  %v1152 = vsub.s32 %v1149, %v1151
  %v1153 = vrot.slane %v1145, %v1152
  %1155 = vset.pattern.permute.xlu0 0
  %1156 = vperm.xlu0 %1155, %v705
  %v1157 = vpop.permute.xlu0 %1156
  %v1160 = vunpack.c.l.s4 839922192
  %v1161 = vunpack.c.0.s8 %v1160
  %v1162 = vlaneseq
  %v1163 = vshrl.u32 %v1162, 7
  %v1164 = vsub.s32 %v1161, %v1163
  %v1165 = vrot.slane %v1157, %v1164
  %1167 = vset.pattern.permute.xlu0 0
  %1168 = vperm.xlu0 %1167, %v706
  %v1169 = vpop.permute.xlu0 %1168
  %v1172 = vunpack.c.l.s4 839922192
  %v1173 = vunpack.c.0.s8 %v1172
  %v1174 = vlaneseq
  %v1175 = vshrl.u32 %v1174, 7
  %v1176 = vsub.s32 %v1173, %v1175
  %v1177 = vrot.slane %v1169, %v1176
  %1179 = vset.pattern.permute.xlu0 0
  %1180 = vperm.xlu0 %1179, %v707
  %v1181 = vpop.permute.xlu0 %1180
  %v1184 = vunpack.c.l.s4 839922192
  %v1185 = vunpack.c.0.s8 %v1184
  %v1186 = vlaneseq
  %v1187 = vshrl.u32 %v1186, 7
  %v1188 = vsub.s32 %v1185, %v1187
  %v1189 = vrot.slane %v1181, %v1188
  %1191 = vset.pattern.permute.xlu0 0
  %1192 = vperm.xlu0 %1191, %v708
  %v1193 = vpop.permute.xlu0 %1192
  %v1196 = vunpack.c.l.s4 839922192
  %v1197 = vunpack.c.0.s8 %v1196
  %v1198 = vlaneseq
  %v1199 = vshrl.u32 %v1198, 7
  %v1200 = vsub.s32 %v1197, %v1199
  %v1201 = vrot.slane %v1193, %v1200
  %1203 = vset.pattern.permute.xlu0 0
  %1204 = vperm.xlu0 %1203, %v709
  %v1205 = vpop.permute.xlu0 %1204
  %v1208 = vunpack.c.l.s4 839922192
  %v1209 = vunpack.c.0.s8 %v1208
  %v1210 = vlaneseq
  %v1211 = vshrl.u32 %v1210, 7
  %v1212 = vsub.s32 %v1209, %v1211
  %v1213 = vrot.slane %v1205, %v1212
  %1215 = vset.pattern.permute.xlu0 0
  %1216 = vperm.xlu0 %1215, %v710
  %v1217 = vpop.permute.xlu0 %1216
  %v1220 = vunpack.c.l.s4 839922192
  %v1221 = vunpack.c.0.s8 %v1220
  %v1222 = vlaneseq
  %v1223 = vshrl.u32 %v1222, 7
  %v1224 = vsub.s32 %v1221, %v1223
  %v1225 = vrot.slane %v1217, %v1224
  %1227 = vset.pattern.permute.xlu0 0
  %1228 = vperm.xlu0 %1227, %v711
  %v1229 = vpop.permute.xlu0 %1228
  %v1232 = vunpack.c.l.s4 839922192
  %v1233 = vunpack.c.0.s8 %v1232
  %v1234 = vlaneseq
  %v1235 = vshrl.u32 %v1234, 7
  %v1236 = vsub.s32 %v1233, %v1235
  %v1237 = vrot.slane %v1229, %v1236
  %1239 = vset.pattern.permute.xlu0 0
  %1240 = vperm.xlu0 %1239, %v712
  %v1241 = vpop.permute.xlu0 %1240
  %v1244 = vunpack.c.l.s4 839922192
  %v1245 = vunpack.c.0.s8 %v1244
  %v1246 = vlaneseq
  %v1247 = vshrl.u32 %v1246, 7
  %v1248 = vsub.s32 %v1245, %v1247
  %v1249 = vrot.slane %v1241, %v1248
  %1251 = vset.pattern.permute.xlu0 0
  %1252 = vperm.xlu0 %1251, %v713
  %v1253 = vpop.permute.xlu0 %1252
  %v1256 = vunpack.c.l.s4 839922192
  %v1257 = vunpack.c.0.s8 %v1256
  %v1258 = vlaneseq
  %v1259 = vshrl.u32 %v1258, 7
  %v1260 = vsub.s32 %v1257, %v1259
  %v1261 = vrot.slane %v1253, %v1260
  %1263 = vset.pattern.permute.xlu0 0
  %1264 = vperm.xlu0 %1263, %v714
  %v1265 = vpop.permute.xlu0 %1264
  %v1268 = vunpack.c.l.s4 839922192
  %v1269 = vunpack.c.0.s8 %v1268
  %v1270 = vlaneseq
  %v1271 = vshrl.u32 %v1270, 7
  %v1272 = vsub.s32 %v1269, %v1271
  %v1273 = vrot.slane %v1265, %v1272
  %1275 = vset.pattern.permute.xlu0 0
  %1276 = vperm.xlu0 %1275, %v715
  %v1277 = vpop.permute.xlu0 %1276
  %v1280 = vunpack.c.l.s4 839922192
  %v1281 = vunpack.c.0.s8 %v1280
  %v1282 = vlaneseq
  %v1283 = vshrl.u32 %v1282, 7
  %v1284 = vsub.s32 %v1281, %v1283
  %v1285 = vrot.slane %v1277, %v1284
  %1287 = vset.pattern.permute.xlu0 0
  %1288 = vperm.xlu0 %1287, %v716
  %v1289 = vpop.permute.xlu0 %1288
  %v1292 = vunpack.c.l.s4 839922192
  %v1293 = vunpack.c.0.s8 %v1292
  %v1294 = vlaneseq
  %v1295 = vshrl.u32 %v1294, 7
  %v1296 = vsub.s32 %v1293, %v1295
  %v1297 = vrot.slane %v1289, %v1296
  %1299 = vset.pattern.permute.xlu0 0
  %1300 = vperm.xlu0 %1299, %v717
  %v1301 = vpop.permute.xlu0 %1300
  %v1304 = vunpack.c.l.s4 839922192
  %v1305 = vunpack.c.0.s8 %v1304
  %v1306 = vlaneseq
  %v1307 = vshrl.u32 %v1306, 7
  %v1308 = vsub.s32 %v1305, %v1307
  %v1309 = vrot.slane %v1301, %v1308
  %1311 = vset.pattern.permute.xlu0 0
  %1312 = vperm.xlu0 %1311, %v718
  %v1313 = vpop.permute.xlu0 %1312
  %v1316 = vunpack.c.l.s4 839922192
  %v1317 = vunpack.c.0.s8 %v1316
  %v1318 = vlaneseq
  %v1319 = vshrl.u32 %v1318, 7
  %v1320 = vsub.s32 %v1317, %v1319
  %v1321 = vrot.slane %v1313, %v1320
  %1323 = vset.pattern.permute.xlu0 0
  %1324 = vperm.xlu0 %1323, %v719
  %v1325 = vpop.permute.xlu0 %1324
  %v1328 = vunpack.c.l.s4 839922192
  %v1329 = vunpack.c.0.s8 %v1328
  %v1330 = vlaneseq
  %v1331 = vshrl.u32 %v1330, 7
  %v1332 = vsub.s32 %v1329, %v1331
  %v1333 = vrot.slane %v1325, %v1332
  %1335 = vset.pattern.permute.xlu0 0
  %1336 = vperm.xlu0 %1335, %v720
  %v1337 = vpop.permute.xlu0 %1336
  %v1340 = vunpack.c.l.s4 839922192
  %v1341 = vunpack.c.0.s8 %v1340
  %v1342 = vlaneseq
  %v1343 = vshrl.u32 %v1342, 7
  %v1344 = vsub.s32 %v1341, %v1343
  %v1345 = vrot.slane %v1337, %v1344
  %1347 = vset.pattern.permute.xlu0 0
  %1348 = vperm.xlu0 %1347, %v721
  %v1349 = vpop.permute.xlu0 %1348
  %v1352 = vunpack.c.l.s4 839922192
  %v1353 = vunpack.c.0.s8 %v1352
  %v1354 = vlaneseq
  %v1355 = vshrl.u32 %v1354, 7
  %v1356 = vsub.s32 %v1353, %v1355
  %v1357 = vrot.slane %v1349, %v1356
  %1359 = vset.pattern.permute.xlu0 0
  %1360 = vperm.xlu0 %1359, %v722
  %v1361 = vpop.permute.xlu0 %1360
  %v1364 = vunpack.c.l.s4 839922192
  %v1365 = vunpack.c.0.s8 %v1364
  %v1366 = vlaneseq
  %v1367 = vshrl.u32 %v1366, 7
  %v1368 = vsub.s32 %v1365, %v1367
  %v1369 = vrot.slane %v1361, %v1368
  %1371 = vset.pattern.permute.xlu0 0
  %1372 = vperm.xlu0 %1371, %v723
  %v1373 = vpop.permute.xlu0 %1372
  %v1376 = vunpack.c.l.s4 839922192
  %v1377 = vunpack.c.0.s8 %v1376
  %v1378 = vlaneseq
  %v1379 = vshrl.u32 %v1378, 7
  %v1380 = vsub.s32 %v1377, %v1379
  %v1381 = vrot.slane %v1373, %v1380
  %1383 = vset.pattern.permute.xlu0 0
  %1384 = vperm.xlu0 %1383, %v724
  %v1385 = vpop.permute.xlu0 %1384
  %v1388 = vunpack.c.l.s4 839922192
  %v1389 = vunpack.c.0.s8 %v1388
  %v1390 = vlaneseq
  %v1391 = vshrl.u32 %v1390, 7
  %v1392 = vsub.s32 %v1389, %v1391
  %v1393 = vrot.slane %v1385, %v1392
  %1395 = vset.pattern.permute.xlu0 0
  %1396 = vperm.xlu0 %1395, %v725
  %v1397 = vpop.permute.xlu0 %1396
  %v1400 = vunpack.c.l.s4 839922192
  %v1401 = vunpack.c.0.s8 %v1400
  %v1402 = vlaneseq
  %v1403 = vshrl.u32 %v1402, 7
  %v1404 = vsub.s32 %v1401, %v1403
  %v1405 = vrot.slane %v1397, %v1404
  %1407 = vset.pattern.permute.xlu0 0
  %1408 = vperm.xlu0 %1407, %v726
  %v1409 = vpop.permute.xlu0 %1408
  %v1412 = vunpack.c.l.s4 839922192
  %v1413 = vunpack.c.0.s8 %v1412
  %v1414 = vlaneseq
  %v1415 = vshrl.u32 %v1414, 7
  %v1416 = vsub.s32 %v1413, %v1415
  %v1417 = vrot.slane %v1409, %v1416
  %1419 = vset.pattern.permute.xlu0 0
  %1420 = vperm.xlu0 %1419, %v727
  %v1421 = vpop.permute.xlu0 %1420
  %v1424 = vunpack.c.l.s4 839922192
  %v1425 = vunpack.c.0.s8 %v1424
  %v1426 = vlaneseq
  %v1427 = vshrl.u32 %v1426, 7
  %v1428 = vsub.s32 %v1425, %v1427
  %v1429 = vrot.slane %v1421, %v1428
  %1431 = vset.pattern.permute.xlu0 0
  %1432 = vperm.xlu0 %1431, %v728
  %v1433 = vpop.permute.xlu0 %1432
  %v1436 = vunpack.c.l.s4 839922192
  %v1437 = vunpack.c.0.s8 %v1436
  %v1438 = vlaneseq
  %v1439 = vshrl.u32 %v1438, 7
  %v1440 = vsub.s32 %v1437, %v1439
  %v1441 = vrot.slane %v1433, %v1440
  %1443 = vset.pattern.permute.xlu0 0
  %1444 = vperm.xlu0 %1443, %v729
  %v1445 = vpop.permute.xlu0 %1444
  %v1448 = vunpack.c.l.s4 839922192
  %v1449 = vunpack.c.0.s8 %v1448
  %v1450 = vlaneseq
  %v1451 = vshrl.u32 %v1450, 7
  %v1452 = vsub.s32 %v1449, %v1451
  %v1453 = vrot.slane %v1445, %v1452
  %1455 = vset.pattern.permute.xlu0 0
  %1456 = vperm.xlu0 %1455, %v730
  %v1457 = vpop.permute.xlu0 %1456
  %v1460 = vunpack.c.l.s4 839922192
  %v1461 = vunpack.c.0.s8 %v1460
  %v1462 = vlaneseq
  %v1463 = vshrl.u32 %v1462, 7
  %v1464 = vsub.s32 %v1461, %v1463
  %v1465 = vrot.slane %v1457, %v1464
  %1467 = vset.pattern.permute.xlu0 0
  %1468 = vperm.xlu0 %1467, %v731
  %v1469 = vpop.permute.xlu0 %1468
  %v1472 = vunpack.c.l.s4 839922192
  %v1473 = vunpack.c.0.s8 %v1472
  %v1474 = vlaneseq
  %v1475 = vshrl.u32 %v1474, 7
  %v1476 = vsub.s32 %v1473, %v1475
  %v1477 = vrot.slane %v1469, %v1476
  %1479 = vset.pattern.permute.xlu0 0
  %1480 = vperm.xlu0 %1479, %v732
  %v1481 = vpop.permute.xlu0 %1480
  %v1484 = vunpack.c.l.s4 839922192
  %v1485 = vunpack.c.0.s8 %v1484
  %v1486 = vlaneseq
  %v1487 = vshrl.u32 %v1486, 7
  %v1488 = vsub.s32 %v1485, %v1487
  %v1489 = vrot.slane %v1481, %v1488
  %1491 = vset.pattern.permute.xlu0 0
  %1492 = vperm.xlu0 %1491, %v733
  %v1493 = vpop.permute.xlu0 %1492
  %v1496 = vunpack.c.l.s4 839922192
  %v1497 = vunpack.c.0.s8 %v1496
  %v1498 = vlaneseq
  %v1499 = vshrl.u32 %v1498, 7
  %v1500 = vsub.s32 %v1497, %v1499
  %v1501 = vrot.slane %v1493, %v1500
  %v1566 = vunpack.c.l.b16 %v745
  %v1567 = vunpack.c.l.b16 %v757
  %v1568 = vunpack.c.l.b16 %v769
  %v1569 = vunpack.c.l.b16 %v781
  %v1570 = vunpack.c.l.b16 %v793
  %v1571 = vunpack.c.l.b16 %v805
  %v1572 = vunpack.c.l.b16 %v817
  %v1573 = vunpack.c.l.b16 %v829
  %v1574 = vunpack.c.l.b16 %v841
  %v1575 = vunpack.c.l.b16 %v853
  %v1576 = vunpack.c.l.b16 %v865
  %v1577 = vunpack.c.l.b16 %v877
  %v1578 = vunpack.c.l.b16 %v889
  %v1579 = vunpack.c.l.b16 %v901
  %v1580 = vunpack.c.l.b16 %v913
  %v1581 = vunpack.c.l.b16 %v925
  %v1582 = vunpack.c.l.b16 %v937
  %v1583 = vunpack.c.l.b16 %v949
  %v1584 = vunpack.c.l.b16 %v961
  %v1585 = vunpack.c.l.b16 %v973
  %v1586 = vunpack.c.l.b16 %v985
  %v1587 = vunpack.c.l.b16 %v997
  %v1588 = vunpack.c.l.b16 %v1009
  %v1589 = vunpack.c.l.b16 %v1021
  %v1590 = vunpack.c.l.b16 %v1033
  %v1591 = vunpack.c.l.b16 %v1045
  %v1592 = vunpack.c.l.b16 %v1057
  %v1593 = vunpack.c.l.b16 %v1069
  %v1594 = vunpack.c.l.b16 %v1081
  %v1595 = vunpack.c.l.b16 %v1093
  %v1596 = vunpack.c.l.b16 %v1105
  %v1597 = vunpack.c.l.b16 %v1117
  %v1598 = vunpack.c.l.b16 %v1129
  %v1599 = vunpack.c.l.b16 %v1141
  %v1600 = vunpack.c.l.b16 %v1153
  %v1601 = vunpack.c.l.b16 %v1165
  %v1602 = vunpack.c.l.b16 %v1177
  %v1603 = vunpack.c.l.b16 %v1189
  %v1604 = vunpack.c.l.b16 %v1201
  %v1605 = vunpack.c.l.b16 %v1213
  %v1606 = vunpack.c.l.b16 %v1225
  %v1607 = vunpack.c.l.b16 %v1237
  %v1608 = vunpack.c.l.b16 %v1249
  %v1609 = vunpack.c.l.b16 %v1261
  %v1610 = vunpack.c.l.b16 %v1273
  %v1611 = vunpack.c.l.b16 %v1285
  %v1612 = vunpack.c.l.b16 %v1297
  %v1613 = vunpack.c.l.b16 %v1309
  %v1614 = vunpack.c.l.b16 %v1321
  %v1615 = vunpack.c.l.b16 %v1333
  %v1616 = vunpack.c.l.b16 %v1345
  %v1617 = vunpack.c.l.b16 %v1357
  %v1618 = vunpack.c.l.b16 %v1369
  %v1619 = vunpack.c.l.b16 %v1381
  %v1620 = vunpack.c.l.b16 %v1393
  %v1621 = vunpack.c.l.b16 %v1405
  %v1622 = vunpack.c.l.b16 %v1417
  %v1623 = vunpack.c.l.b16 %v1429
  %v1624 = vunpack.c.l.b16 %v1441
  %v1625 = vunpack.c.l.b16 %v1453
  %v1626 = vunpack.c.l.b16 %v1465
  %v1627 = vunpack.c.l.b16 %v1477
  %v1628 = vunpack.c.l.b16 %v1489
  %v1629 = vunpack.c.l.b16 %v1501
  %v1630 = vpack.c.b16 %v1567, %v1566
  %v1631 = vpack.c.b16 %v1569, %v1568
  %v1632 = vpack.c.b16 %v1571, %v1570
  %v1633 = vpack.c.b16 %v1573, %v1572
  %v1634 = vpack.c.b16 %v1575, %v1574
  %v1635 = vpack.c.b16 %v1577, %v1576
  %v1636 = vpack.c.b16 %v1579, %v1578
  %v1637 = vpack.c.b16 %v1581, %v1580
  %v1638 = vpack.c.b16 %v1583, %v1582
  %v1639 = vpack.c.b16 %v1585, %v1584
  %v1640 = vpack.c.b16 %v1587, %v1586
  %v1641 = vpack.c.b16 %v1589, %v1588
  %v1642 = vpack.c.b16 %v1591, %v1590
  %v1643 = vpack.c.b16 %v1593, %v1592
  %v1644 = vpack.c.b16 %v1595, %v1594
  %v1645 = vpack.c.b16 %v1597, %v1596
  %v1646 = vpack.c.b16 %v1599, %v1598
  %v1647 = vpack.c.b16 %v1601, %v1600
  %v1648 = vpack.c.b16 %v1603, %v1602
  %v1649 = vpack.c.b16 %v1605, %v1604
  %v1650 = vpack.c.b16 %v1607, %v1606
  %v1651 = vpack.c.b16 %v1609, %v1608
  %v1652 = vpack.c.b16 %v1611, %v1610
  %v1653 = vpack.c.b16 %v1613, %v1612
  %v1654 = vpack.c.b16 %v1615, %v1614
  %v1655 = vpack.c.b16 %v1617, %v1616
  %v1656 = vpack.c.b16 %v1619, %v1618
  %v1657 = vpack.c.b16 %v1621, %v1620
  %v1658 = vpack.c.b16 %v1623, %v1622
  %v1659 = vpack.c.b16 %v1625, %v1624
  %v1660 = vpack.c.b16 %v1627, %v1626
  %v1661 = vpack.c.b16 %v1629, %v1628
  %v1694 = vadd.bf16 %v638, %v1630
  %v1695 = vadd.bf16 %v639, %v1631
  %v1696 = vadd.bf16 %v640, %v1632
  %v1697 = vadd.bf16 %v641, %v1633
  %v1698 = vadd.bf16 %v642, %v1634
  %v1699 = vadd.bf16 %v643, %v1635
  %v1700 = vadd.bf16 %v644, %v1636
  %v1701 = vadd.bf16 %v645, %v1637
  %v1702 = vadd.bf16 %v646, %v1638
  %v1703 = vadd.bf16 %v647, %v1639
  %v1704 = vadd.bf16 %v648, %v1640
  %v1705 = vadd.bf16 %v649, %v1641
  %v1706 = vadd.bf16 %v650, %v1642
  %v1707 = vadd.bf16 %v651, %v1643
  %v1708 = vadd.bf16 %v652, %v1644
  %v1709 = vadd.bf16 %v653, %v1645
  %v1710 = vadd.bf16 %v654, %v1646
  %v1711 = vadd.bf16 %v655, %v1647
  %v1712 = vadd.bf16 %v656, %v1648
  %v1713 = vadd.bf16 %v657, %v1649
  %v1714 = vadd.bf16 %v658, %v1650
  %v1715 = vadd.bf16 %v659, %v1651
  %v1716 = vadd.bf16 %v660, %v1652
  %v1717 = vadd.bf16 %v661, %v1653
  %v1718 = vadd.bf16 %v662, %v1654
  %v1719 = vadd.bf16 %v663, %v1655
  %v1720 = vadd.bf16 %v664, %v1656
  %v1721 = vadd.bf16 %v665, %v1657
  %v1722 = vadd.bf16 %v666, %v1658
  %v1723 = vadd.bf16 %v667, %v1659
  %v1724 = vadd.bf16 %v668, %v1660
  %v1725 = vadd.bf16 %v669, %v1661
  %v1726 = vmax.bf16 %v1694, 0
  %v1727 = vmax.bf16 %v1695, 0
  %v1728 = vmax.bf16 %v1696, 0
  %v1729 = vmax.bf16 %v1697, 0
  %v1730 = vmax.bf16 %v1698, 0
  %v1731 = vmax.bf16 %v1699, 0
  %v1732 = vmax.bf16 %v1700, 0
  %v1733 = vmax.bf16 %v1701, 0
  %v1734 = vmax.bf16 %v1702, 0
  %v1735 = vmax.bf16 %v1703, 0
  %v1736 = vmax.bf16 %v1704, 0
  %v1737 = vmax.bf16 %v1705, 0
  %v1738 = vmax.bf16 %v1706, 0
  %v1739 = vmax.bf16 %v1707, 0
  %v1740 = vmax.bf16 %v1708, 0
  %v1741 = vmax.bf16 %v1709, 0
  %v1742 = vmax.bf16 %v1710, 0
  %v1743 = vmax.bf16 %v1711, 0
  %v1744 = vmax.bf16 %v1712, 0
  %v1745 = vmax.bf16 %v1713, 0
  %v1746 = vmax.bf16 %v1714, 0
  %v1747 = vmax.bf16 %v1715, 0
  %v1748 = vmax.bf16 %v1716, 0
  %v1749 = vmax.bf16 %v1717, 0
  %v1750 = vmax.bf16 %v1718, 0
  %v1751 = vmax.bf16 %v1719, 0
  %v1752 = vmax.bf16 %v1720, 0
  %v1753 = vmax.bf16 %v1721, 0
  %v1754 = vmax.bf16 %v1722, 0
  %v1755 = vmax.bf16 %v1723, 0
  %v1756 = vmax.bf16 %v1724, 0
  %v1757 = vmax.bf16 %v1725, 0
  %v1758 = vld [vmem:[%s3] sm:$0xf]
  %v1759 = vld [vmem:[#allocation2] sm:$0x1]
  %1761 = vset.pattern.permute.xlu0 0
  %1762 = vperm.xlu0 %1761, %v1759
  %v1763 = vpop.permute.xlu0 %1762
  %v1765 = vlaneseq
  %v1766 = vshrl.u32 %v1765, 7
  %v1767 = vsub.s32 0, %v1766
  %v1768 = vrot.slane %v1763, %v1767
  %v1771 = vunpack.c.l.s4 1966171168
  %v1772 = vunpack.c.0.s8 %v1771
  %v1773 = vlaneseq
  %v1774 = vshrl.u32 %v1773, 7
  %v1775 = vsub.s32 %v1772, %v1774
  %v1776 = vrot.slane %v1758, %v1775
  %v1777 = vcombine.high %v1776, %v1776
  %v1779 = vunpack.c.l.s4 1966171168
  %v1780 = vunpack.c.0.s8 %v1779
  %v1781 = vlaneseq
  %v1782 = vshrl.u32 %v1781, 7
  %v1783 = vsub.s32 %v1780, %v1782
  %v1784 = vrot.slane %v1776, %v1783
  %v1786 = vunpack.c.l.s4 1966171168
  %v1787 = vunpack.c.0.s8 %v1786
  %v1788 = vlaneseq
  %v1789 = vshrl.u32 %v1788, 7
  %v1790 = vsub.s32 %v1787, %v1789
  %v1791 = vrot.slane %v1777, %v1790
  %v1792 = vcombine.high %v1784, %v1784
  %v1793 = vcombine.high %v1791, %v1791
  %1798 = vmatprep.subr.bf16.mxu0 0
  %1799 = vmatpush1.bf16.msra.mxu0 %v1726
  %1800 = vmatprep.subr.bf16.mxu0 0
  %1801 = vmatpush1.bf16.msra.mxu0 %v1727
  %1802 = vmatprep.subr.bf16.mxu0 0
  %1803 = vmatpush1.bf16.msra.mxu0 %v1728
  %1804 = vmatprep.subr.bf16.mxu0 0
  %1805 = vmatpush1.bf16.msra.mxu0 %v1729
  %1806 = vmatprep.subr.bf16.mxu0 0
  %1807 = vmatpush1.bf16.msra.mxu0 %v1730
  %1808 = vmatprep.subr.bf16.mxu0 0
  %1809 = vmatpush1.bf16.msra.mxu0 %v1731
  %1810 = vmatprep.subr.bf16.mxu0 0
  %1811 = vmatpush1.bf16.msra.mxu0 %v1732
  %1812 = vmatprep.subr.bf16.mxu0 0
  %1813 = vmatpush1.bf16.msra.mxu0 %v1733
  %1814 = vmatprep.subr.bf16.mxu0 0
  %1815 = vmatpush1.bf16.msra.mxu0 %v1734
  %1816 = vmatprep.subr.bf16.mxu0 0
  %1817 = vmatpush1.bf16.msra.mxu0 %v1735
  %1818 = vmatprep.subr.bf16.mxu0 0
  %1819 = vmatpush1.bf16.msra.mxu0 %v1736
  %1820 = vmatprep.subr.bf16.mxu0 0
  %1821 = vmatpush1.bf16.msra.mxu0 %v1737
  %1822 = vmatprep.subr.bf16.mxu0 0
  %1823 = vmatpush1.bf16.msra.mxu0 %v1738
  %1824 = vmatprep.subr.bf16.mxu0 0
  %1825 = vmatpush1.bf16.msra.mxu0 %v1739
  %1826 = vmatprep.subr.bf16.mxu0 0
  %1827 = vmatpush1.bf16.msra.mxu0 %v1740
  %1828 = vmatprep.subr.bf16.mxu0 0
  %1829 = vmatpush1.bf16.msra.mxu0 %v1741
  %1830 = vmatprep.mubr.bf16.mxu0 %v1791
  %1831 = vmatmul.mubr.bf16.gmra.mrb[0].mxu0 %v1784
  %v1832 = vpop.f32.mrb[0].mxu0
  %v1833 = vadd.f32 %v1768, %v1832
  %v1834 = vpop.f32.mrb[0].mxu0
  %v1835 = vpop.f32.mrb[0].mxu0
  %v1836 = vpop.f32.mrb[0].mxu0
  %1837 = vdwg.mxu0
  %1838 = vmatprep.subr.bf16.mxu0 0
  %1839 = vmatpush1.bf16.msra.mxu0 %v1742
  %1840 = vmatprep.subr.bf16.mxu0 0
  %1841 = vmatpush1.bf16.msra.mxu0 %v1743
  %1842 = vmatprep.subr.bf16.mxu0 0
  %1843 = vmatpush1.bf16.msra.mxu0 %v1744
  %1844 = vmatprep.subr.bf16.mxu0 0
  %1845 = vmatpush1.bf16.msra.mxu0 %v1745
  %1846 = vmatprep.subr.bf16.mxu0 0
  %1847 = vmatpush1.bf16.msra.mxu0 %v1746
  %1848 = vmatprep.subr.bf16.mxu0 0
  %1849 = vmatpush1.bf16.msra.mxu0 %v1747
  %1850 = vmatprep.subr.bf16.mxu0 0
  %1851 = vmatpush1.bf16.msra.mxu0 %v1748
  %1852 = vmatprep.subr.bf16.mxu0 0
  %1853 = vmatpush1.bf16.msra.mxu0 %v1749
  %1854 = vmatprep.subr.bf16.mxu0 0
  %1855 = vmatpush1.bf16.msra.mxu0 %v1750
  %1856 = vmatprep.subr.bf16.mxu0 0
  %1857 = vmatpush1.bf16.msra.mxu0 %v1751
  %1858 = vmatprep.subr.bf16.mxu0 0
  %1859 = vmatpush1.bf16.msra.mxu0 %v1752
  %1860 = vmatprep.subr.bf16.mxu0 0
  %1861 = vmatpush1.bf16.msra.mxu0 %v1753
  %1862 = vmatprep.subr.bf16.mxu0 0
  %1863 = vmatpush1.bf16.msra.mxu0 %v1754
  %1864 = vmatprep.subr.bf16.mxu0 0
  %1865 = vmatpush1.bf16.msra.mxu0 %v1755
  %1866 = vmatprep.subr.bf16.mxu0 0
  %1867 = vmatpush1.bf16.msra.mxu0 %v1756
  %1868 = vmatprep.subr.bf16.mxu0 0
  %1869 = vmatpush1.bf16.msra.mxu0 %v1757
  %1870 = vmatprep.mubr.bf16.mxu0 %v1793
  %1871 = vmatmul.mubr.bf16.gmra.mrb[0].mxu0 %v1792
  %v1872 = vpop.f32.mrb[0].mxu0
  %v1873 = vadd.f32 %v1833, %v1872
  %v1874 = vpop.f32.mrb[0].mxu0
  %v1875 = vpop.f32.mrb[0].mxu0
  %v1876 = vpop.f32.mrb[0].mxu0
  %1877 = vdwg.mxu0
  %1878 = vst [vmem:[%s5] sm:$0x1] %v1873
  // Predicated region
  $region22: #{moonnet_forward.1} parent=0 // pred_check
    _
  $region23: #{moonnet_forward.1} parent=0 // pred_check_branch
    %1880 = sbr.rel (0) target = $region25
  $region24: #{moonnet_forward.1} parent=0 // pred_region
    _
  $region25: #{moonnet_forward.1} parent=0 // pred_fallthru
    _
  // Predicated region
  $region26: #{moonnet_forward.1} parent=0 // pred_check
    _
  $region27: #{moonnet_forward.1} parent=0 // pred_check_branch
    %1882 = sbr.rel (0) target = $region29
  $region28: #{moonnet_forward.1} parent=0 // pred_region
    _
  $region29: #{moonnet_forward.1} parent=0 // pred_fallthru
    _

</llo_original>
